<compile_context>
chip_gen: v7x
topology: tpu7x:2x2x1
jax: 0.10.0
libtpu: 0.0.40
codegen_flags: <defaults>
</compile_context>

<pallas_src>
import functools

import jax
import jax.numpy as jnp
from jax import lax
from jax.experimental import pallas as pl
from jax.experimental.pallas import tpu as pltpu

_H1, _H2, _OUT = 256, 64, 2
_BN_EPS = 1e-5
_MAX_TILE = 1024                    # max rows of x per grid step (tiled path)
_FUSED_MAX_BATCH = 1024             # single-launch fused path threshold (rows)
_VMEM_LIMIT = 32 * 1024 * 1024      # explicit scoped-VMEM limit (safe on v5e/v6e/v7x)


def _choose_tile(in_len):
    """Batch-tile rows: multiple of 128, x block (double-buffered f32) under budget."""
    budget = 8 * 1024 * 1024                      # bytes per x-block buffer
    t = min(_MAX_TILE, budget // max(in_len * 4, 1))
    return max(128, (t // 128) * 128)


# ----------------------------------------------------------- fused (small) --
def _fused_kernel(x_ref, w1_ref, b1_ref, gamma_ref, beta_ref,
                  w2_ref, b2_ref, w3t_ref, b3_ref, o_ref):
    """Whole batch resident in VMEM. Writes the transposed (2, batch) output."""
    x_bf = x_ref[...].astype(jnp.bfloat16)
    h1 = jnp.dot(x_bf, w1_ref[...], preferred_element_type=jnp.float32) + b1_ref[...]
    h1 = jnp.maximum(h1, 0.0)
    # BatchNorm1d (training mode): exact centered (biased) variance, all in f32.
    mean = jnp.mean(h1, axis=0, keepdims=True)
    cen = h1 - mean
    var = jnp.mean(cen * cen, axis=0, keepdims=True)
    scale = gamma_ref[...] * lax.rsqrt(var + _BN_EPS)        # EUP rsqrt
    h1n = cen * scale + beta_ref[...]
    h2 = jnp.dot(h1n.astype(jnp.bfloat16), w2_ref[...],
                 preferred_element_type=jnp.float32) + b2_ref[...]
    h2 = jnp.maximum(h2, 0.0)
    # out^T = w3^T @ h2^T  (A @ B^T on the MXU) -> lane-dense (2, batch) store.
    out_t = lax.dot_general(w3t_ref[...], h2.astype(jnp.bfloat16),
                            dimension_numbers=(((1,), (1,)), ((), ())),
                            preferred_element_type=jnp.float32)
    o_ref[...] = out_t + b3_ref[...]


# ------------------------------------------------------------------ pass 1 --
def _stats_kernel(x_ref, w1_ref, b1_ref, part_ref, *, tile_b, batch):
    """Per-tile partial [sum, sum_sq] of h1 = relu(x @ w1 + b1)."""
    x_bf = x_ref[...].astype(jnp.bfloat16)
    h1 = jnp.dot(x_bf, w1_ref[...], preferred_element_type=jnp.float32) + b1_ref[...]
    h1 = jnp.maximum(h1, 0.0)
    if batch % tile_b != 0:         # static: only needed when a block is ragged
        row = (pl.program_id(0) * tile_b
               + lax.broadcasted_iota(jnp.int32, (tile_b, 1), 0))
        h1 = jnp.where(row < batch, h1, 0.0)
    part_ref[0, 0:1, :] = jnp.sum(h1, axis=0, keepdims=True)        # [1, 256]
    part_ref[0, 1:2, :] = jnp.sum(h1 * h1, axis=0, keepdims=True)   # [1, 256]


# ------------------------------------------------------------------ pass 2 --
def _proj_kernel(x_ref, w1_ref, b1_ref, w2f_ref, b2f_ref, w3t_ref, b3_ref, o_ref):
    """Recompute Linear1, BN already folded into (w2f, b2f), transposed output."""
    x_bf = x_ref[...].astype(jnp.bfloat16)
    h1 = jnp.dot(x_bf, w1_ref[...], preferred_element_type=jnp.float32) + b1_ref[...]
    h1 = jnp.maximum(h1, 0.0)
    # Linear(256, 64) with BN scale/shift folded into the weights/bias.
    h2 = jnp.dot(h1.astype(jnp.bfloat16), w2f_ref[...],
                 preferred_element_type=jnp.float32) + b2f_ref[...]
    h2 = jnp.maximum(h2, 0.0)
    # Linear(64, 2), computed transposed so the output store is lane-dense.
    out_t = lax.dot_general(w3t_ref[...], h2.astype(jnp.bfloat16),
                            dimension_numbers=(((1,), (1,)), ((), ())),
                            preferred_element_type=jnp.float32)     # (2, tile_b)
    o_ref[...] = out_t + b3_ref[...]


# ------------------------------------------------------------------ wrapper -
def projection00(x, params):
    """x: [batch, in_len] float32.  Returns [batch, 2] float32."""
    batch, in_len = x.shape

    w1 = params["w1"].astype(jnp.bfloat16)                 # (in_len, 256)
    b1 = params["b1"]                                      # (1, 256) f32
    gamma, beta = params["gamma"], params["beta"]          # (1, 256) f32
    w2_f32, b2 = params["w2"], params["b2"]                # (256, 64), (1, 64) f32
    w3t = params["w3"].T.astype(jnp.bfloat16)              # (2, 64)
    b3_col = params["b3"].reshape(_OUT, 1)                 # (2, 1) f32

    # ---------------- fused single-launch path (small / medium batch) -------
    if batch <= _FUSED_MAX_BATCH:
        out_t = pl.pallas_call(
            _fused_kernel,
            out_shape=jax.ShapeDtypeStruct((_OUT, batch), jnp.float32),
            compiler_params=pltpu.CompilerParams(vmem_limit_bytes=_VMEM_LIMIT),
        )(x, w1, b1, gamma, beta, w2_f32.astype(jnp.bfloat16), b2, w3t, b3_col)
        return out_t.T.reshape(-1, _OUT)

    # ---------------- tiled two-pass path (large batch) ---------------------
    tile_b = _choose_tile(in_len)
    n_tiles = pl.cdiv(batch, tile_b)

    cparams = pltpu.CompilerParams(dimension_semantics=("parallel",),
                                   vmem_limit_bytes=_VMEM_LIMIT)

    def const(shape):   # full-array block, constant index map -> VMEM-resident
        return pl.BlockSpec(shape, lambda i: (0,) * len(shape))

    x_spec = pl.BlockSpec((tile_b, in_len), lambda i: (i, 0))

    # pass 1: per-tile partial batch statistics of ReLU(Linear1)
    stats = pl.pallas_call(
        functools.partial(_stats_kernel, tile_b=tile_b, batch=batch),
        out_shape=jax.ShapeDtypeStruct((n_tiles, 2, _H1), jnp.float32),
        grid=(n_tiles,),
        in_specs=[x_spec, const((in_len, _H1)), const((1, _H1))],
        out_specs=pl.BlockSpec((1, 2, _H1), lambda i: (i, 0, 0)),
        compiler_params=cparams,
        cost_estimate=pl.CostEstimate(
            flops=2 * batch * in_len * _H1 + 4 * batch * _H1,
            transcendentals=0,
            bytes_accessed=x.size * 4 + w1.size * 2 + n_tiles * 2 * _H1 * 4),
    )(x, w1, b1)

    # tiny full-batch BN reduction, folded into Linear2 (all in f32).
    # NOTE: variance via E[x^2]-E[x]^2 (clamped at 0); benign for ReLU outputs.
    sums = jnp.sum(stats, axis=0)                                # [2, 256]
    mean = sums[0:1] / batch                                     # [1, 256]
    var = jnp.maximum(sums[1:2] / batch - mean * mean, 0.0)      # biased variance
    inv_std = lax.rsqrt(var + _BN_EPS)
    scale = gamma * inv_std                                      # [1, 256]
    shift = beta - mean * scale                                  # [1, 256]
    w2f = (w2_f32 * scale.T).astype(jnp.bfloat16)                # fold BN into w2
    b2f = b2 + shift @ w2_f32                                    # fold BN into b2

    # pass 2: Linear1 -> folded Linear2 -> Linear3, transposed lane-dense output.
    out_t = pl.pallas_call(
        _proj_kernel,
        out_shape=jax.ShapeDtypeStruct((_OUT, batch), jnp.float32),
        grid=(n_tiles,),
        in_specs=[x_spec,
                  const((in_len, _H1)), const((1, _H1)),
                  const((_H1, _H2)), const((1, _H2)),
                  const((_OUT, _H2)), const((_OUT, 1))],
        out_specs=pl.BlockSpec((_OUT, tile_b), lambda i: (0, i)),
        compiler_params=cparams,
        cost_estimate=pl.CostEstimate(
            flops=2 * batch * (in_len * _H1 + _H1 * _H2 + _H2 * _OUT)
                  + 3 * batch * (_H1 + _H2),
            transcendentals=0,
            bytes_accessed=(x.size * 4 + w1.size * 2 + w2f.size * 2 + w3t.size * 2
                            + 4 * (b1.size + b2f.size + b3_col.size)
                            + batch * _OUT * 4)),
    )(x, w1, b1, w2f, b2f, w3t, b3_col)

    return out_t.T.reshape(-1, _OUT)


# ------------------------------------------------------------------ helpers -
def init_params(key, in_len):
    """Deterministic parameter init (PyTorch-Linear-style uniform bounds)."""
    ks = jax.random.split(key, 6)

    def linear(kw, kb, fan_in, fan_out):
        bound = 1.0 / jnp.sqrt(jnp.float32(fan_in))
        w = jax.random.uniform(kw, (fan_in, fan_out), jnp.float32, -bound, bound)
        b = jax.random.uniform(kb, (1, fan_out), jnp.float32, -bound, bound)
        return w, b

    w1, b1 = linear(ks[0], ks[1], in_len, _H1)
    w2, b2 = linear(ks[2], ks[3], _H1, _H2)
    w3, b3 = linear(ks[4], ks[5], _H2, _OUT)
    return {
        "w1": w1, "b1": b1,
        "gamma": jnp.ones((1, _H1), jnp.float32),   # BatchNorm1d weight init
        "beta": jnp.zeros((1, _H1), jnp.float32),   # BatchNorm1d bias init
        "w2": w2, "b2": b2,
        "w3": w3, "b3": b3,
    }


def _reference(x, params):
    """Pure-JAX reference: PyTorch forward semantics with bf16 matmul operands
    (f32 accumulation) and un-folded BatchNorm -- an independent check of the
    in-kernel BN fold / transposed output."""
    bf = jnp.bfloat16
    h1 = jnp.dot(x.astype(bf), params["w1"].astype(bf),
                 preferred_element_type=jnp.float32) + params["b1"]
    h1 = jnp.maximum(h1, 0.0)
    mean = jnp.mean(h1, axis=0, keepdims=True)
    var = jnp.mean((h1 - mean) ** 2, axis=0, keepdims=True)
    h1n = ((h1 - mean) * lax.rsqrt(var + _BN_EPS)
           * params["gamma"] + params["beta"])
    h2 = jnp.dot(h1n.astype(bf), params["w2"].astype(bf),
                 preferred_element_type=jnp.float32) + params["b2"]
    h2 = jnp.maximum(h2, 0.0)
    out = jnp.dot(h2.astype(bf), params["w3"].astype(bf),
                  preferred_element_type=jnp.float32) + params["b3"]
    return out.reshape(-1, _OUT)


if __name__ == "__main__":
    in_len = 32     # "output_len of pretrained model * 2"

    key = jax.random.PRNGKey(0)
    k_x, k_x2, k_p = jax.random.split(key, 3)
    params = init_params(k_p, in_len)

    # Small batch (not a multiple of 8) -> fused single-launch path.
    batch = 6
    x = jax.random.normal(k_x, (batch, in_len), dtype=jnp.float32)
    out = projection00(x, params)
    jax.block_until_ready(out)
    assert out.shape == (batch, 2), out.shape
    err = float(jnp.max(jnp.abs(out - _reference(x, params))))
    assert err < 1e-2, f"fused path max abs error vs reference: {err}"

    # Larger ragged batch -> tiled two-pass path (stats + folded-BN projection).
    batch2 = 2500
    x2 = jax.random.normal(k_x2, (batch2, in_len), dtype=jnp.float32)
    out2 = projection00(x2, params)
    jax.block_until_ready(out2)
    assert out2.shape == (batch2, 2), out2.shape
    err2 = float(jnp.max(jnp.abs(out2 - _reference(x2, params))))
    assert err2 < 5e-2, f"tiled path max abs error vs reference: {err2}"

    print("KERNEL_OK")
</pallas_src>

<mosaic_0001>
module attributes {stable_mosaic.version = 11 : i64} {
  func.func @_fused_kernel(%arg0: memref<6x32xf32, #tpu.memory_space<vmem>>, %arg1: memref<32x256xbf16, #tpu.memory_space<vmem>>, %arg2: memref<1x256xf32, #tpu.memory_space<vmem>>, %arg3: memref<1x256xf32, #tpu.memory_space<vmem>>, %arg4: memref<1x256xf32, #tpu.memory_space<vmem>>, %arg5: memref<256x64xbf16, #tpu.memory_space<vmem>>, %arg6: memref<1x64xf32, #tpu.memory_space<vmem>>, %arg7: memref<2x64xbf16, #tpu.memory_space<vmem>>, %arg8: memref<2x1xf32, #tpu.memory_space<vmem>>, %arg9: memref<2x6xf32, #tpu.memory_space<vmem>>) attributes {dimension_semantics = [], scalar_prefetch = 0 : i64, scratch_operands = 0 : i64, tpu.core_type = #tpu.core_type<tc>} {
    %c0 = arith.constant 0 : index
    %c0_0 = arith.constant 0 : index
    %0 = vector.load %arg0[%c0, %c0_0] : memref<6x32xf32, #tpu.memory_space<vmem>>, vector<6x32xf32>
    %1 = arith.truncf %0 : vector<6x32xf32> to vector<6x32xbf16>
    %c0_1 = arith.constant 0 : index
    %c0_2 = arith.constant 0 : index
    %2 = vector.load %arg1[%c0_1, %c0_2] : memref<32x256xbf16, #tpu.memory_space<vmem>>, vector<32x256xbf16>
    %cst = arith.constant dense<0.000000e+00> : vector<6x256xf32>
    %3 = tpu.matmul %1, %2, %cst {dimension_numbers = #tpu.dot_dimension_numbers<[1], [0], [0], [1], [0, 0, 1, 1], [], []>} : vector<6x32xbf16>, vector<32x256xbf16>, vector<6x256xf32> -> vector<6x256xf32>
    %c0_3 = arith.constant 0 : index
    %c0_4 = arith.constant 0 : index
    %4 = vector.load %arg2[%c0_3, %c0_4] : memref<1x256xf32, #tpu.memory_space<vmem>>, vector<1x256xf32>
    %5 = vector.broadcast %4 : vector<1x256xf32> to vector<6x256xf32>
    %6 = arith.addf %3, %5 : vector<6x256xf32>
    %cst_5 = arith.constant 0.000000e+00 : f32
    %7 = vector.broadcast %cst_5 : f32 to vector<6x256xf32>
    %8 = arith.maximumf %6, %7 : vector<6x256xf32>
    %cst_6 = arith.constant dense<0.000000e+00> : vector<256xf32>
    %9 = vector.multi_reduction <add>, %8, %cst_6 [0] : vector<6x256xf32> to vector<256xf32>
    %10 = vector.shape_cast %9 : vector<256xf32> to vector<1x256xf32>
    %cst_7 = arith.constant 6.000000e+00 : f32
    %11 = vector.broadcast %cst_7 : f32 to vector<1x256xf32>
    %12 = arith.divf %10, %11 : vector<1x256xf32>
    %13 = vector.broadcast %12 : vector<1x256xf32> to vector<6x256xf32>
    %14 = arith.subf %8, %13 : vector<6x256xf32>
    %15 = arith.mulf %14, %14 : vector<6x256xf32>
    %cst_8 = arith.constant dense<0.000000e+00> : vector<256xf32>
    %16 = vector.multi_reduction <add>, %15, %cst_8 [0] : vector<6x256xf32> to vector<256xf32>
    %17 = vector.shape_cast %16 : vector<256xf32> to vector<1x256xf32>
    %cst_9 = arith.constant 6.000000e+00 : f32
    %18 = vector.broadcast %cst_9 : f32 to vector<1x256xf32>
    %19 = arith.divf %17, %18 : vector<1x256xf32>
    %c0_10 = arith.constant 0 : index
    %c0_11 = arith.constant 0 : index
    %20 = vector.load %arg3[%c0_10, %c0_11] : memref<1x256xf32, #tpu.memory_space<vmem>>, vector<1x256xf32>
    %cst_12 = arith.constant 9.99999974E-6 : f32
    %21 = vector.broadcast %cst_12 : f32 to vector<1x256xf32>
    %22 = arith.addf %19, %21 : vector<1x256xf32>
    %23 = math.rsqrt %22 : vector<1x256xf32>
    %24 = arith.mulf %20, %23 : vector<1x256xf32>
    %25 = vector.broadcast %24 : vector<1x256xf32> to vector<6x256xf32>
    %26 = arith.mulf %14, %25 : vector<6x256xf32>
    %c0_13 = arith.constant 0 : index
    %c0_14 = arith.constant 0 : index
    %27 = vector.load %arg4[%c0_13, %c0_14] : memref<1x256xf32, #tpu.memory_space<vmem>>, vector<1x256xf32>
    %28 = vector.broadcast %27 : vector<1x256xf32> to vector<6x256xf32>
    %29 = arith.addf %26, %28 : vector<6x256xf32>
    %30 = arith.truncf %29 : vector<6x256xf32> to vector<6x256xbf16>
    %c0_15 = arith.constant 0 : index
    %c0_16 = arith.constant 0 : index
    %31 = vector.load %arg5[%c0_15, %c0_16] : memref<256x64xbf16, #tpu.memory_space<vmem>>, vector<256x64xbf16>
    %cst_17 = arith.constant dense<0.000000e+00> : vector<6x64xf32>
    %32 = tpu.matmul %30, %31, %cst_17 {dimension_numbers = #tpu.dot_dimension_numbers<[1], [0], [0], [1], [0, 0, 1, 1], [], []>} : vector<6x256xbf16>, vector<256x64xbf16>, vector<6x64xf32> -> vector<6x64xf32>
    %c0_18 = arith.constant 0 : index
    %c0_19 = arith.constant 0 : index
    %33 = vector.load %arg6[%c0_18, %c0_19] : memref<1x64xf32, #tpu.memory_space<vmem>>, vector<1x64xf32>
    %34 = vector.broadcast %33 : vector<1x64xf32> to vector<6x64xf32>
    %35 = arith.addf %32, %34 : vector<6x64xf32>
    %cst_20 = arith.constant 0.000000e+00 : f32
    %36 = vector.broadcast %cst_20 : f32 to vector<6x64xf32>
    %37 = arith.maximumf %35, %36 : vector<6x64xf32>
    %c0_21 = arith.constant 0 : index
    %c0_22 = arith.constant 0 : index
    %38 = vector.load %arg7[%c0_21, %c0_22] : memref<2x64xbf16, #tpu.memory_space<vmem>>, vector<2x64xbf16>
    %39 = arith.truncf %37 : vector<6x64xf32> to vector<6x64xbf16>
    %cst_23 = arith.constant dense<0.000000e+00> : vector<2x6xf32>
    %40 = tpu.matmul %38, %39, %cst_23 {dimension_numbers = #tpu.dot_dimension_numbers<[1], [1], [0], [0], [0, 0, 1, 0], [], []>} : vector<2x64xbf16>, vector<6x64xbf16>, vector<2x6xf32> -> vector<2x6xf32>
    %c0_24 = arith.constant 0 : index
    %c0_25 = arith.constant 0 : index
    %41 = vector.load %arg8[%c0_24, %c0_25] : memref<2x1xf32, #tpu.memory_space<vmem>>, vector<2x1xf32>
    %42 = vector.broadcast %41 : vector<2x1xf32> to vector<2x6xf32>
    %43 = arith.addf %40, %42 : vector<2x6xf32>
    %c0_26 = arith.constant 0 : index
    %c0_27 = arith.constant 0 : index
    %44 = vector.load %arg9[%c0_26, %c0_27] : memref<2x6xf32, #tpu.memory_space<vmem>>, vector<2x6xf32>
    tpu.vector_store %arg9[%c0_26, %c0_27], %43 {strides = array<i32>} : memref<2x6xf32, #tpu.memory_space<vmem>>, vector<2x6xf32>,
    return
  }
}

</mosaic_0001>

<llo_original>
// kernel: tpu_custom_call.1
$region0: #{tpu_custom_call.1}
  #allocation0 [shape = 'u32[]', space=smem, size = 0x4, offset = 0x4, fixed_abs, tag = 'smem constant byte address 0x4 - core index']
  #allocation1 [shape = 'u32[144,128]{1,0:T(1,128)}', space=vmem, size = 0x12000, scoped, tag = 'internal scratch']
  %s0 = inlined_call_operand.vmem [shape: f32[6,32], index: 0, kind: input, shape index: {}]
  %s1 = inlined_call_operand.vmem [shape: bf16[32,256], index: 1, kind: input, shape index: {}]
  %s2 = inlined_call_operand.vmem [shape: f32[1,256], index: 2, kind: input, shape index: {}]
  %s3 = inlined_call_operand.vmem [shape: f32[1,256], index: 3, kind: input, shape index: {}]
  %s4 = inlined_call_operand.vmem [shape: f32[1,256], index: 4, kind: input, shape index: {}]
  %s5 = inlined_call_operand.vmem [shape: bf16[256,64], index: 5, kind: input, shape index: {}]
  %s6 = inlined_call_operand.vmem [shape: f32[1,64], index: 6, kind: input, shape index: {}]
  %s7 = inlined_call_operand.vmem [shape: bf16[2,64], index: 7, kind: input, shape index: {}]
  %s8 = inlined_call_operand.vmem [shape: f32[2,1], index: 8, kind: input, shape index: {}]
  %s9 = inlined_call_operand.hbm [shape: f32[2,6], index: 9, kind: output, shape index: {}]
  %s10 = sld [smem:[#allocation0]]
  $region46: #{tpu_custom_call.1} parent=0
    _
  %s12 = ssub.s32 1, %s10
  %s13 = scalar_select 0, %s12, %s10
  $region1: #{tpu_custom_call.1} parent=0
    #allocation2 [shape = 'u8[1024]{0}', space=vmem, size = 0x400, scoped, tag = 'output window, operand 0, single buffered']
    #allocation3 [shape = 's32[1]{0}', space=sflag, size = 0x4, scoped, tag = 'scoped memory for tpu_custom_call.1']
    %14 = vsyncpa [#allocation3], 0
    // Predicated region
    $region2: #{tpu_custom_call.1} parent=1 // pred_check
      _
    $region3: #{tpu_custom_call.1} parent=1 // pred_check_branch
      %16 = sbr.rel (0) target = $region5
    $region4: #{tpu_custom_call.1} parent=1 // pred_region
      _
    $region5: #{tpu_custom_call.1} parent=1 // pred_fallthru
      _
    // Predicated region
    $region6: #{tpu_custom_call.1} parent=1 // pred_check
      _
    $region7: #{tpu_custom_call.1} parent=1 // pred_check_branch
      %18 = sbr.rel (0) target = $region9
    $region8: #{tpu_custom_call.1} parent=1 // pred_region
      _
    $region9: #{tpu_custom_call.1} parent=1 // pred_fallthru
      _
    // Predicated region
    $region10: #{tpu_custom_call.1} parent=1 // pred_check
      _
    $region11: #{tpu_custom_call.1} parent=1 // pred_check_branch
      %20 = sbr.rel (0) target = $region13
    $region12: #{tpu_custom_call.1} parent=1 // pred_region
      _
    $region13: #{tpu_custom_call.1} parent=1 // pred_fallthru
      _
    // Predicated region
    $region14: #{tpu_custom_call.1} parent=1 // pred_check
      _
    $region15: #{tpu_custom_call.1} parent=1 // pred_check_branch
      %22 = sbr.rel (0) target = $region17
    $region16: #{tpu_custom_call.1} parent=1 // pred_region
      _
    $region17: #{tpu_custom_call.1} parent=1 // pred_fallthru
      _
    // Predicated region
    $region18: #{tpu_custom_call.1} parent=1 // pred_check
      _
    $region19: #{tpu_custom_call.1} parent=1 // pred_check_branch
      %24 = sbr.rel (0) target = $region21
    $region20: #{tpu_custom_call.1} parent=1 // pred_region
      _
    $region21: #{tpu_custom_call.1} parent=1 // pred_fallthru
      _
    // Predicated region
    $region22: #{tpu_custom_call.1} parent=1 // pred_check
      _
    $region23: #{tpu_custom_call.1} parent=1 // pred_check_branch
      %26 = sbr.rel (0) target = $region25
    $region24: #{tpu_custom_call.1} parent=1 // pred_region
      _
    $region25: #{tpu_custom_call.1} parent=1 // pred_fallthru
      _
    // Predicated region
    $region26: #{tpu_custom_call.1} parent=1 // pred_check
      _
    $region27: #{tpu_custom_call.1} parent=1 // pred_check_branch
      %28 = sbr.rel (0) target = $region29
    $region28: #{tpu_custom_call.1} parent=1 // pred_region
      _
    $region29: #{tpu_custom_call.1} parent=1 // pred_fallthru
      _
    // Predicated region
    $region30: #{tpu_custom_call.1} parent=1 // pred_check
      _
    $region31: #{tpu_custom_call.1} parent=1 // pred_check_branch
      %30 = sbr.rel (0) target = $region33
    $region32: #{tpu_custom_call.1} parent=1 // pred_region
      _
    $region33: #{tpu_custom_call.1} parent=1 // pred_fallthru
      _
    // Predicated region
    $region34: #{tpu_custom_call.1} parent=1 // pred_check
      _
    $region35: #{tpu_custom_call.1} parent=1 // pred_check_branch
      %32 = sbr.rel (0) target = $region37
    $region36: #{tpu_custom_call.1} parent=1 // pred_region
      _
    $region37: #{tpu_custom_call.1} parent=1 // pred_fallthru
      _
    %v34 = vld [vmem:[%s0] sm:$0x3f]
    %v35 = vpack.c.bf16 %v34, %v34
    %v36 = vld [vmem:[%s1] sm:$0xff]
    %v37 = vld [vmem:[%s1 + $0x8] sm:$0xff]
    %v38 = vld [vmem:[%s1 + $0x10] sm:$0xff]
    %v39 = vld [vmem:[%s1 + $0x18] sm:$0xff]
    %v40 = vld [vmem:[%s2] sm:$0x3]
    %v42 = vlaneseq
    %v43 = vshrl.u32 %v42, 7
    %v44 = vsub.s32 0, %v43
    %v45 = vrot.slane %v40, %v44
    %v46 = vlaneseq
    %v47 = vshrl.u32 %v46, 7
    %v48 = vsub.s32 1, %v47
    %v49 = vrot.slane %v40, %v48
    %v56 = vunpack.c.l.b16 %v36
    %v57 = vunpack.c.h.b16 %v36
    %v58 = vunpack.c.l.b16 %v37
    %v59 = vunpack.c.h.b16 %v37
    %v60 = vunpack.c.l.b16 %v38
    %v61 = vunpack.c.h.b16 %v38
    %v62 = vunpack.c.l.b16 %v39
    %v63 = vunpack.c.h.b16 %v39
    %v64 = vpack.c.b16 %v58, %v56
    %v65 = vpack.c.b16 %v59, %v57
    %v66 = vpack.c.b16 %v62, %v60
    %v67 = vpack.c.b16 %v63, %v61
    %vm72 = vcmask 261120
    %v74 = vsel %vm72, %v35, 0
    %76 = vmatprep.subr.bf16.mxu0 %v65
    %77 = vmatpush1.bf16.msra.mxu0 %v64
    %78 = vmatprep.subr.bf16.mxu0 %v67
    %79 = vmatpush1.bf16.msra.mxu0 %v66
    %80 = vmatprep.subr.bf16.mxu0 0
    %81 = vmatpush1.bf16.msra.mxu0 0
    %82 = vmatprep.subr.bf16.mxu0 0
    %83 = vmatpush1.bf16.msra.mxu0 0
    %84 = vmatprep.subr.bf16.mxu0 0
    %85 = vmatpush1.bf16.msra.mxu0 0
    %86 = vmatprep.subr.bf16.mxu0 0
    %87 = vmatpush1.bf16.msra.mxu0 0
    %88 = vmatprep.subr.bf16.mxu0 0
    %89 = vmatpush1.bf16.msra.mxu0 0
    %90 = vmatprep.subr.bf16.mxu0 0
    %91 = vmatpush1.bf16.msra.mxu0 0
    %92 = vmatprep.subr.bf16.mxu0 0
    %93 = vmatpush1.bf16.msra.mxu0 0
    %94 = vmatprep.subr.bf16.mxu0 0
    %95 = vmatpush1.bf16.msra.mxu0 0
    %96 = vmatprep.subr.bf16.mxu0 0
    %97 = vmatpush1.bf16.msra.mxu0 0
    %98 = vmatprep.subr.bf16.mxu0 0
    %99 = vmatpush1.bf16.msra.mxu0 0
    %100 = vmatprep.subr.bf16.mxu0 0
    %101 = vmatpush1.bf16.msra.mxu0 0
    %102 = vmatprep.subr.bf16.mxu0 0
    %103 = vmatpush1.bf16.msra.mxu0 0
    %104 = vmatprep.subr.bf16.mxu0 0
    %105 = vmatpush1.bf16.msra.mxu0 0
    %106 = vmatprep.subr.bf16.mxu0 0
    %107 = vmatpush1.bf16.msra.mxu0 0
    %108 = vmatprep.mubr.bf16.mxu0 0
    %109 = vmatmul.mubr.bf16.gmra.mrb[0].mxu0 %v74
    %v110 = vpop.f32.mrb[0].mxu0
    %v111 = vadd.f32 %v45, %v110
    %v112 = vpop.f32.mrb[0].mxu0
    %v113 = vadd.f32 %v49, %v112
    %v114 = vpop.f32.mrb[0].mxu0
    %v115 = vpop.f32.mrb[0].mxu0
    %116 = vdwg.mxu0
    %v117 = vmax.f32 %v111, 0.0
    %v118 = vmax.f32 %v113, 0.0
    %vm119 = vcmask 1045504
    %v120 = vsel %vm119, %v117, 0.0
    %v121 = vrot.slane %v120, 4
    %v122 = vadd.f32 %v120, %v121
    %v123 = vrot.slane %v122, 2
    %v124 = vadd.f32 %v122, %v123
    %v125 = vrot.slane %v124, 1
    %v126 = vadd.f32 %v124, %v125
    %v127 = vsel %vm119, %v118, 0.0
    %v128 = vrot.slane %v127, 4
    %v129 = vadd.f32 %v127, %v128
    %v130 = vrot.slane %v129, 2
    %v131 = vadd.f32 %v129, %v130
    %v132 = vrot.slane %v131, 1
    %v133 = vadd.f32 %v131, %v132
    %v134 = vrcp.pop 6.0
    %v135 = vmul.f32 %v126, %v134
    %v136 = vmul.f32 %v133, %v134
    %v137 = vsub.f32 %v117, %v135
    %v138 = vsub.f32 %v118, %v136
    %v139 = vmul.f32 %v137, %v137
    %v140 = vmul.f32 %v138, %v138
    %v141 = vsel %vm119, %v139, 0.0
    %v142 = vrot.slane %v141, 4
    %v143 = vadd.f32 %v141, %v142
    %v144 = vrot.slane %v143, 2
    %v145 = vadd.f32 %v143, %v144
    %v146 = vrot.slane %v145, 1
    %v147 = vadd.f32 %v145, %v146
    %v148 = vsel %vm119, %v140, 0.0
    %v149 = vrot.slane %v148, 4
    %v150 = vadd.f32 %v148, %v149
    %v151 = vrot.slane %v150, 2
    %v152 = vadd.f32 %v150, %v151
    %v153 = vrot.slane %v152, 1
    %v154 = vadd.f32 %v152, %v153
    %v155 = vmul.f32 %v147, %v134
    %v156 = vmul.f32 %v154, %v134
    %v157 = vld [vmem:[%s3] sm:$0x3]
    %v158 = vadd.f32 %v155, 1e-05
    %v159 = vadd.f32 %v156, 1e-05
    %v160 = vrsqrt.pop %v158
    %v161 = vrsqrt.pop %v159
    %v164 = vcombine.low %v160, %v161
    %v166 = vunpack.c.l.s4 1966171168
    %v167 = vunpack.c.0.s8 %v166
    %v168 = vlaneseq
    %v169 = vshrl.u32 %v168, 7
    %v170 = vsub.s32 %v167, %v169
    %v171 = vrot.slane %v164, %v170
    %v173 = vunpack.c.l.s4 1966171168
    %v174 = vunpack.c.0.s8 %v173
    %v175 = vlaneseq
    %v176 = vshrl.u32 %v175, 7
    %v177 = vsub.s32 %v174, %v176
    %v178 = vrot.slane %v171, %v177
    %v180 = vmul.f32 %v157, %v178
    %v182 = vlaneseq
    %v183 = vshrl.u32 %v182, 7
    %v184 = vsub.s32 0, %v183
    %v185 = vrot.slane %v180, %v184
    %v186 = vlaneseq
    %v187 = vshrl.u32 %v186, 7
    %v188 = vsub.s32 1, %v187
    %v189 = vrot.slane %v180, %v188
    %v192 = vmul.f32 %v137, %v185
    %v193 = vmul.f32 %v138, %v189
    %v194 = vld [vmem:[%s4] sm:$0x3]
    %v196 = vlaneseq
    %v197 = vshrl.u32 %v196, 7
    %v198 = vsub.s32 0, %v197
    %v199 = vrot.slane %v194, %v198
    %v200 = vlaneseq
    %v201 = vshrl.u32 %v200, 7
    %v202 = vsub.s32 1, %v201
    %v203 = vrot.slane %v194, %v202
    %v206 = vadd.f32 %v192, %v199
    %v207 = vadd.f32 %v193, %v203
    %v208 = vpack.c.bf16 %v206, %v206
    %v209 = vpack.c.bf16 %v207, %v207
    %v210 = vld [vmem:[%s5] sm:$0xf]
    %v211 = vld [vmem:[%s5 + $0x4] sm:$0xf]
    %v212 = vld [vmem:[%s5 + $0x8] sm:$0xf]
    %v213 = vld [vmem:[%s5 + $0xc] sm:$0xf]
    %v214 = vld [vmem:[%s5 + $0x10] sm:$0xf]
    %v215 = vld [vmem:[%s5 + $0x14] sm:$0xf]
    %v216 = vld [vmem:[%s5 + $0x18] sm:$0xf]
    %v217 = vld [vmem:[%s5 + $0x1c] sm:$0xf]
    %v218 = vld [vmem:[%s5 + $0x20] sm:$0xf]
    %v219 = vld [vmem:[%s5 + $0x24] sm:$0xf]
    %v220 = vld [vmem:[%s5 + $0x28] sm:$0xf]
    %v221 = vld [vmem:[%s5 + $0x2c] sm:$0xf]
    %v222 = vld [vmem:[%s5 + $0x30] sm:$0xf]
    %v223 = vld [vmem:[%s5 + $0x34] sm:$0xf]
    %v224 = vld [vmem:[%s5 + $0x38] sm:$0xf]
    %v225 = vld [vmem:[%s5 + $0x3c] sm:$0xf]
    %v226 = vld [vmem:[%s5 + $0x40] sm:$0xf]
    %v227 = vld [vmem:[%s5 + $0x44] sm:$0xf]
    %v228 = vld [vmem:[%s5 + $0x48] sm:$0xf]
    %v229 = vld [vmem:[%s5 + $0x4c] sm:$0xf]
    %v230 = vld [vmem:[%s5 + $0x50] sm:$0xf]
    %v231 = vld [vmem:[%s5 + $0x54] sm:$0xf]
    %v232 = vld [vmem:[%s5 + $0x58] sm:$0xf]
    %v233 = vld [vmem:[%s5 + $0x5c] sm:$0xf]
    %v234 = vld [vmem:[%s5 + $0x60] sm:$0xf]
    %v235 = vld [vmem:[%s5 + $0x64] sm:$0xf]
    %v236 = vld [vmem:[%s5 + $0x68] sm:$0xf]
    %v237 = vld [vmem:[%s5 + $0x6c] sm:$0xf]
    %v238 = vld [vmem:[%s5 + $0x70] sm:$0xf]
    %v239 = vld [vmem:[%s5 + $0x74] sm:$0xf]
    %v240 = vld [vmem:[%s5 + $0x78] sm:$0xf]
    %v241 = vld [vmem:[%s5 + $0x7c] sm:$0xf]
    %v242 = vld [vmem:[%s6] sm:$0x1]
    %v244 = vlaneseq
    %v245 = vshrl.u32 %v244, 7
    %v246 = vsub.s32 0, %v245
    %v247 = vrot.slane %v242, %v246
    %v281 = vunpack.c.l.b16 %v210
    %v282 = vunpack.c.l.b16 %v211
    %v283 = vunpack.c.l.b16 %v212
    %v284 = vunpack.c.l.b16 %v213
    %v285 = vunpack.c.l.b16 %v214
    %v286 = vunpack.c.l.b16 %v215
    %v287 = vunpack.c.l.b16 %v216
    %v288 = vunpack.c.l.b16 %v217
    %v289 = vunpack.c.l.b16 %v218
    %v290 = vunpack.c.l.b16 %v219
    %v291 = vunpack.c.l.b16 %v220
    %v292 = vunpack.c.l.b16 %v221
    %v293 = vunpack.c.l.b16 %v222
    %v294 = vunpack.c.l.b16 %v223
    %v295 = vunpack.c.l.b16 %v224
    %v296 = vunpack.c.l.b16 %v225
    %v297 = vunpack.c.l.b16 %v226
    %v298 = vunpack.c.l.b16 %v227
    %v299 = vunpack.c.l.b16 %v228
    %v300 = vunpack.c.l.b16 %v229
    %v301 = vunpack.c.l.b16 %v230
    %v302 = vunpack.c.l.b16 %v231
    %v303 = vunpack.c.l.b16 %v232
    %v304 = vunpack.c.l.b16 %v233
    %v305 = vunpack.c.l.b16 %v234
    %v306 = vunpack.c.l.b16 %v235
    %v307 = vunpack.c.l.b16 %v236
    %v308 = vunpack.c.l.b16 %v237
    %v309 = vunpack.c.l.b16 %v238
    %v310 = vunpack.c.l.b16 %v239
    %v311 = vunpack.c.l.b16 %v240
    %v312 = vunpack.c.l.b16 %v241
    %v313 = vpack.c.b16 %v282, %v281
    %v314 = vpack.c.b16 %v284, %v283
    %v315 = vpack.c.b16 %v286, %v285
    %v316 = vpack.c.b16 %v288, %v287
    %v317 = vpack.c.b16 %v290, %v289
    %v318 = vpack.c.b16 %v292, %v291
    %v319 = vpack.c.b16 %v294, %v293
    %v320 = vpack.c.b16 %v296, %v295
    %v321 = vpack.c.b16 %v298, %v297
    %v322 = vpack.c.b16 %v300, %v299
    %v323 = vpack.c.b16 %v302, %v301
    %v324 = vpack.c.b16 %v304, %v303
    %v325 = vpack.c.b16 %v306, %v305
    %v326 = vpack.c.b16 %v308, %v307
    %v327 = vpack.c.b16 %v310, %v309
    %v328 = vpack.c.b16 %v312, %v311
    %345 = vmatprep.subr.bf16.mxu0 0
    %346 = vmatpush1.bf16.msra.mxu0 %v313
    %347 = vmatprep.subr.bf16.mxu0 0
    %348 = vmatpush1.bf16.msra.mxu0 %v314
    %349 = vmatprep.subr.bf16.mxu0 0
    %350 = vmatpush1.bf16.msra.mxu0 %v315
    %351 = vmatprep.subr.bf16.mxu0 0
    %352 = vmatpush1.bf16.msra.mxu0 %v316
    %353 = vmatprep.subr.bf16.mxu0 0
    %354 = vmatpush1.bf16.msra.mxu0 %v317
    %355 = vmatprep.subr.bf16.mxu0 0
    %356 = vmatpush1.bf16.msra.mxu0 %v318
    %357 = vmatprep.subr.bf16.mxu0 0
    %358 = vmatpush1.bf16.msra.mxu0 %v319
    %359 = vmatprep.subr.bf16.mxu0 0
    %360 = vmatpush1.bf16.msra.mxu0 %v320
    %361 = vmatprep.subr.bf16.mxu0 0
    %362 = vmatpush1.bf16.msra.mxu0 %v321
    %363 = vmatprep.subr.bf16.mxu0 0
    %364 = vmatpush1.bf16.msra.mxu0 %v322
    %365 = vmatprep.subr.bf16.mxu0 0
    %366 = vmatpush1.bf16.msra.mxu0 %v323
    %367 = vmatprep.subr.bf16.mxu0 0
    %368 = vmatpush1.bf16.msra.mxu0 %v324
    %369 = vmatprep.subr.bf16.mxu0 0
    %370 = vmatpush1.bf16.msra.mxu0 %v325
    %371 = vmatprep.subr.bf16.mxu0 0
    %372 = vmatpush1.bf16.msra.mxu0 %v326
    %373 = vmatprep.subr.bf16.mxu0 0
    %374 = vmatpush1.bf16.msra.mxu0 %v327
    %375 = vmatprep.subr.bf16.mxu0 0
    %376 = vmatpush1.bf16.msra.mxu0 %v328
    %377 = vmatprep.mubr.bf16.mxu0 %v209
    %378 = vmatmul.mubr.bf16.gmra.mrb[0].mxu0 %v208
    %v379 = vpop.f32.mrb[0].mxu0
    %v380 = vadd.f32 %v247, %v379
    %v381 = vpop.f32.mrb[0].mxu0
    %v382 = vpop.f32.mrb[0].mxu0
    %v383 = vpop.f32.mrb[0].mxu0
    %384 = vdwg.mxu0
    %v385 = vmax.f32 %v380, 0.0
    %v386 = vld [vmem:[%s7] sm:$0x1]
    %v387 = vpack.c.bf16 %v385, %v385
    %v388 = vld [vmem:[%s8] sm:$0x3]
    %390 = vset.pattern.permute.xlu0 0
    %391 = vperm.xlu0 %390, %v388
    %v392 = vpop.permute.xlu0 %391
    %vm394 = vcmask 523264
    %v396 = vsel %vm394, %v386, 0
    %v399 = vsel %vm394, %v387, 0
    %401 = vmatprep.subr.bf16.mxu0 0
    %402 = vmatpush1.bf16.xpose.msra.mxu0 %v399
    %403 = vmatprep.subr.bf16.mxu0 0
    %404 = vmatpush1.bf16.xpose.msra.mxu0 0
    %405 = vmatprep.subr.bf16.mxu0 0
    %406 = vmatpush1.bf16.xpose.msra.mxu0 0
    %407 = vmatprep.subr.bf16.mxu0 0
    %408 = vmatpush1.bf16.xpose.msra.mxu0 0
    %409 = vmatprep.subr.bf16.mxu0 0
    %410 = vmatpush1.bf16.xpose.msra.mxu0 0
    %411 = vmatprep.subr.bf16.mxu0 0
    %412 = vmatpush1.bf16.xpose.msra.mxu0 0
    %413 = vmatprep.subr.bf16.mxu0 0
    %414 = vmatpush1.bf16.xpose.msra.mxu0 0
    %415 = vmatprep.subr.bf16.mxu0 0
    %416 = vmatpush1.bf16.xpose.msra.mxu0 0
    %417 = vmatprep.subr.bf16.mxu0 0
    %418 = vmatpush1.bf16.xpose.msra.mxu0 0
    %419 = vmatprep.subr.bf16.mxu0 0
    %420 = vmatpush1.bf16.xpose.msra.mxu0 0
    %421 = vmatprep.subr.bf16.mxu0 0
    %422 = vmatpush1.bf16.xpose.msra.mxu0 0
    %423 = vmatprep.subr.bf16.mxu0 0
    %424 = vmatpush1.bf16.xpose.msra.mxu0 0
    %425 = vmatprep.subr.bf16.mxu0 0
    %426 = vmatpush1.bf16.xpose.msra.mxu0 0
    %427 = vmatprep.subr.bf16.mxu0 0
    %428 = vmatpush1.bf16.xpose.msra.mxu0 0
    %429 = vmatprep.subr.bf16.mxu0 0
    %430 = vmatpush1.bf16.xpose.msra.mxu0 0
    %431 = vmatprep.subr.bf16.mxu0 0
    %432 = vmatpush1.bf16.xpose.msra.mxu0 0
    %433 = vmatprep.mubr.bf16.mxu0 0
    %434 = vmatmul.mubr.bf16.gmra.mrb[0].mxu0 %v396
    %v435 = vpop.f32.mrb[0].mxu0
    %v436 = vadd.f32 %v392, %v435
    %v437 = vpop.f32.mrb[0].mxu0
    %v438 = vpop.f32.mrb[0].mxu0
    %v439 = vpop.f32.mrb[0].mxu0
    %440 = vdwg.mxu0
    %vm441 = vcmask 41984
    %442 = vst.msk [vmem:[#allocation2] sm:$0x3] %vm441, %v436
    // Predicated region
    $region38: #{tpu_custom_call.1} parent=1 // pred_check
      _
    $region39: #{tpu_custom_call.1} parent=1 // pred_check_branch
      %444 = sbr.rel (0) target = $region41
    $region40: #{tpu_custom_call.1} parent=1 // pred_region
      %s446 = ssub.s32 32, 32
      %447 = vsyncadd [#allocation3], %s446
      %s449 = sshll.u32 [#allocation2], 4
      %s450 = int_to_ptr.vmem [resolvable:$true] %s449
      %452 = dma.vmem_to_hbm [thread:$0]  %s450, 32, %s9, [#allocation3]
    $region41: #{tpu_custom_call.1} parent=1 // pred_fallthru
      _
    // Predicated region
    $region42: #{tpu_custom_call.1} parent=1 // pred_check
      _
    $region43: #{tpu_custom_call.1} parent=1 // pred_check_branch
      %454 = sbr.rel (0) target = $region45
    $region44: #{tpu_custom_call.1} parent=1 // pred_region
      %455 = dma.done [#allocation3], 32
    $region45: #{tpu_custom_call.1} parent=1 // pred_fallthru
      _
    %456 = vsyncpa [#allocation3], 1

</llo_original>
